<compile_context>
chip_gen: v7x
topology: tpu7x:2x2x1
jax: 0.10.0
libtpu: 0.0.40
codegen_flags: <defaults>
</compile_context>

<pallas_src>
import jax
import jax.numpy as jnp
from jax.experimental import pallas as pl
from jax.experimental.pallas import tpu as pltpu

FEAT = 10  # Linear is 10 -> 10


def _a1b1_kernel(x_ref, w_ref, b_ref, o_ref):
    """One batch tile: ReLU(x) @ W + b."""
    x = x_ref[...].astype(jnp.float32)
    x = jnp.maximum(x, 0.0)                      # d2 : ReLU
    y = jnp.dot(x, w_ref[...].astype(jnp.float32),
                preferred_element_type=jnp.float32)   # d1 : Linear matmul (MXU)
    y = y + b_ref[...].astype(jnp.float32)            # d1 : bias (broadcast over rows)
    o_ref[...] = y.astype(o_ref.dtype)


def a1b1_forward(x, w, b, *, tb=512):
    """x: (B, 10).  w: (10, 10) stored as (in, out).  b: (1, 10)."""
    B, F = x.shape
    assert F == FEAT
    assert w.shape == (FEAT, FEAT) and b.shape == (1, FEAT)

    # Batch tile: multiple of 8 sublanes (or the full batch if it is smaller).
    tb = min(tb, B)
    if tb != B:
        tb = max(8, (tb // 8) * 8)
    grid = (pl.cdiv(B, tb),)

    return pl.pallas_call(
        _a1b1_kernel,
        out_shape=jax.ShapeDtypeStruct((B, FEAT), x.dtype),
        grid=grid,
        in_specs=[
            pl.BlockSpec((tb, FEAT), lambda i: (i, 0)),    # x: tiled over batch
            pl.BlockSpec((FEAT, FEAT), lambda i: (0, 0)),  # W: resident across steps
            pl.BlockSpec((1, FEAT), lambda i: (0, 0)),     # b: resident across steps
        ],
        out_specs=pl.BlockSpec((tb, FEAT), lambda i: (i, 0)),
        compiler_params=pltpu.CompilerParams(
            dimension_semantics=("parallel",),  # batch steps are independent
        ),
    )(x, w, b)


def init_params(key):
    """nn.Linear-style init: U(-1/sqrt(in), 1/sqrt(in))."""
    bound = 1.0 / jnp.sqrt(jnp.float32(FEAT))
    k_w, k_b = jax.random.split(key)
    w = jax.random.uniform(k_w, (FEAT, FEAT), dtype=jnp.float32,
                           minval=-bound, maxval=bound)  # (in, out)
    b = jax.random.uniform(k_b, (1, FEAT), dtype=jnp.float32,
                           minval=-bound, maxval=bound)
    return w, b


def reference_forward(x, w, b):
    """Pure-JAX reference of the PyTorch forward."""
    return jnp.maximum(x, 0.0) @ w + b


if __name__ == "__main__":
    key = jax.random.PRNGKey(0)
    k_x, k_p = jax.random.split(key)

    B = 8  # small batch consistent with the 10-feature Linear
    x = jax.random.normal(k_x, (B, FEAT), dtype=jnp.float32)
    w, b = init_params(k_p)

    out = a1b1_forward(x, w, b)
    out = jax.block_until_ready(out)

    ref = reference_forward(x, w, b)
    assert out.shape == (B, FEAT)
    assert jnp.allclose(out, ref, atol=1e-5, rtol=1e-5), "mismatch vs reference"

    print("KERNEL_OK")
</pallas_src>

<mosaic_0001>
module attributes {stable_mosaic.version = 11 : i64} {
  func.func @_a1b1_kernel(%arg0: i32, %arg1: memref<8x10xf32, #tpu.memory_space<vmem>>, %arg2: memref<10x10xf32, #tpu.memory_space<vmem>>, %arg3: memref<1x10xf32, #tpu.memory_space<vmem>>, %arg4: memref<8x10xf32, #tpu.memory_space<vmem>>) attributes {dimension_semantics = [#tpu.dimension_semantics<parallel>], iteration_bounds = array<i64: 1>, scalar_prefetch = 0 : i64, scratch_operands = 0 : i64, tpu.core_type = #tpu.core_type<tc>, window_params = [{transform_indices = @transform_0, window_bounds = array<i64: 8, 10>}, {pipeline_mode = #tpu.pipeline_mode<synchronous>, transform_indices = @transform_1, window_bounds = array<i64: 10, 10>}, {pipeline_mode = #tpu.pipeline_mode<synchronous>, transform_indices = @transform_2, window_bounds = array<i64: 1, 10>}, {transform_indices = @transform_3, window_bounds = array<i64: 8, 10>}]} {
    %c0 = arith.constant 0 : index
    %c0_0 = arith.constant 0 : index
    %0 = vector.load %arg1[%c0, %c0_0] : memref<8x10xf32, #tpu.memory_space<vmem>>, vector<8x10xf32>
    %cst = arith.constant 0.000000e+00 : f32
    %1 = vector.broadcast %cst : f32 to vector<8x10xf32>
    %2 = arith.maximumf %0, %1 : vector<8x10xf32>
    %c0_1 = arith.constant 0 : index
    %c0_2 = arith.constant 0 : index
    %3 = vector.load %arg2[%c0_1, %c0_2] : memref<10x10xf32, #tpu.memory_space<vmem>>, vector<10x10xf32>
    %cst_3 = arith.constant dense<0.000000e+00> : vector<8x10xf32>
    %4 = tpu.matmul %2, %3, %cst_3 {dimension_numbers = #tpu.dot_dimension_numbers<[1], [0], [0], [1], [0, 0, 1, 1], [], []>} : vector<8x10xf32>, vector<10x10xf32>, vector<8x10xf32> -> vector<8x10xf32>
    %c0_4 = arith.constant 0 : index
    %c0_5 = arith.constant 0 : index
    %5 = vector.load %arg3[%c0_4, %c0_5] : memref<1x10xf32, #tpu.memory_space<vmem>>, vector<1x10xf32>
    %6 = vector.broadcast %5 : vector<1x10xf32> to vector<8x10xf32>
    %7 = arith.addf %4, %6 : vector<8x10xf32>
    %c0_6 = arith.constant 0 : index
    %c0_7 = arith.constant 0 : index
    %8 = vector.load %arg4[%c0_6, %c0_7] : memref<8x10xf32, #tpu.memory_space<vmem>>, vector<8x10xf32>
    tpu.vector_store %arg4[%c0_6, %c0_7], %7 {strides = array<i32>} : memref<8x10xf32, #tpu.memory_space<vmem>>, vector<8x10xf32>,
    return
  }
  func.func @transform_0(%arg0: i32) -> (i32, i32) {
    %c0_i32 = arith.constant 0 : i32
    %c0_i32_0 = arith.constant 0 : i32
    return %arg0, %c0_i32 : i32, i32
  }
  func.func @transform_1(%arg0: i32) -> (i32, i32) {
    %c0_i32 = arith.constant 0 : i32
    %c0_i32_0 = arith.constant 0 : i32
    %c0_i32_1 = arith.constant 0 : i32
    return %c0_i32, %c0_i32_0 : i32, i32
  }
  func.func @transform_2(%arg0: i32) -> (i32, i32) {
    %c0_i32 = arith.constant 0 : i32
    %c0_i32_0 = arith.constant 0 : i32
    %c0_i32_1 = arith.constant 0 : i32
    return %c0_i32, %c0_i32_0 : i32, i32
  }
  func.func @transform_3(%arg0: i32) -> (i32, i32) {
    %c0_i32 = arith.constant 0 : i32
    %c0_i32_0 = arith.constant 0 : i32
    return %arg0, %c0_i32 : i32, i32
  }
}

</mosaic_0001>

<llo_original>
// kernel: tpu_custom_call.1
$region0: #{tpu_custom_call.1}
  #allocation0 [shape = 'u32[]', space=smem, size = 0x4, offset = 0x4, fixed_abs, tag = 'smem constant byte address 0x4 - core index']
  #allocation1 [shape = 'u32[144,128]{1,0:T(1,128)}', space=vmem, size = 0x12000, scoped, tag = 'internal scratch']
  %s0 = inlined_call_operand.hbm [shape: f32[8,10], index: 0, kind: input, shape index: {}]
  %s1 = inlined_call_operand.hbm [shape: f32[10,10], index: 1, kind: input, shape index: {}]
  %s2 = inlined_call_operand.vmem [shape: f32[1,10], index: 2, kind: input, shape index: {}]
  %s3 = inlined_call_operand.hbm [shape: f32[8,10], index: 3, kind: output, shape index: {}]
  %s4 = sld [smem:[#allocation0]]
  $region30: #{tpu_custom_call.1} parent=0
    _
  %s6 = ssub.s32 1, %s4
  %s7 = scalar_select 0, %s6, %s4
  $region1: #{tpu_custom_call.1} parent=0
    #allocation2 [shape = 'u8[4096]{0}', space=vmem, size = 0x1000, scoped, tag = 'input window, operand 0, single buffered']
    #allocation3 [shape = 's32[1]{0}', space=sflag, size = 0x4, scoped, tag = 'scoped memory for tpu_custom_call.1']
    #allocation4 [shape = 's32[1]{0}', space=sflag, size = 0x4, scoped, tag = 'scoped memory for tpu_custom_call.1']
    #allocation5 [shape = 'u8[8192]{0}', space=vmem, size = 0x2000, scoped, tag = 'input window, operand 1, single buffered']
    #allocation6 [shape = 's32[1]{0}', space=sflag, size = 0x4, scoped, tag = 'scoped memory for tpu_custom_call.1']
    #allocation7 [shape = 'u8[4096]{0}', space=vmem, size = 0x1000, scoped, tag = 'output window, operand 0, single buffered']
    %8 = vsyncpa [#allocation3], 0
    %9 = vsyncpa [#allocation6], 0
    %10 = vsyncpa [#allocation4], 0
    // Predicated region
    $region2: #{tpu_custom_call.1} parent=1 // pred_check
      _
    $region3: #{tpu_custom_call.1} parent=1 // pred_check_branch
      %12 = sbr.rel (0) target = $region5
    $region4: #{tpu_custom_call.1} parent=1 // pred_region
      %s14 = ssub.s32 128, 128
      %15 = vsyncadd [#allocation3], %s14
      %s17 = sshll.u32 [#allocation2], 4
      %s18 = int_to_ptr.vmem [resolvable:$true] %s17
      %20 = dma.hbm_to_vmem [thread:$0]  %s0, 128, %s18, [#allocation3]
    $region5: #{tpu_custom_call.1} parent=1 // pred_fallthru
      _
    // Predicated region
    $region6: #{tpu_custom_call.1} parent=1 // pred_check
      _
    $region7: #{tpu_custom_call.1} parent=1 // pred_check_branch
      %22 = sbr.rel (0) target = $region9
    $region8: #{tpu_custom_call.1} parent=1 // pred_region
      %s24 = ssub.s32 256, 256
      %25 = vsyncadd [#allocation6], %s24
      %s26 = sshll.u32 [#allocation5], 4
      %s27 = int_to_ptr.vmem [resolvable:$true] %s26
      %32 = dma.hbm_to_vmem [thread:$0]  %s1, 256, %s27, [#allocation6], 128, 128, 8
    $region9: #{tpu_custom_call.1} parent=1 // pred_fallthru
      _
    // Predicated region
    $region10: #{tpu_custom_call.1} parent=1 // pred_check
      _
    $region11: #{tpu_custom_call.1} parent=1 // pred_check_branch
      %34 = sbr.rel (0) target = $region13
    $region12: #{tpu_custom_call.1} parent=1 // pred_region
      _
    $region13: #{tpu_custom_call.1} parent=1 // pred_fallthru
      _
    // Predicated region
    $region14: #{tpu_custom_call.1} parent=1 // pred_check
      _
    $region15: #{tpu_custom_call.1} parent=1 // pred_check_branch
      %36 = sbr.rel (0) target = $region17
    $region16: #{tpu_custom_call.1} parent=1 // pred_region
      %37 = dma.done [#allocation3], 128
    $region17: #{tpu_custom_call.1} parent=1 // pred_fallthru
      _
    // Predicated region
    $region18: #{tpu_custom_call.1} parent=1 // pred_check
      _
    $region19: #{tpu_custom_call.1} parent=1 // pred_check_branch
      %39 = sbr.rel (0) target = $region21
    $region20: #{tpu_custom_call.1} parent=1 // pred_region
      %40 = dma.done [#allocation6], 256
    $region21: #{tpu_custom_call.1} parent=1 // pred_fallthru
      _
    %v41 = vld [vmem:[#allocation2] sm:$0xff]
    %v42 = vmax.f32 %v41, 0.0
    %v43 = vld [vmem:[#allocation5] sm:$0xff]
    %v44 = vld [vmem:[#allocation5 + $0x8] sm:$0x3]
    %v45 = vld [vmem:[%s2] sm:$0x1]
    %v47 = vlaneseq
    %v48 = vshrl.u32 %v47, 7
    %v49 = vsub.s32 0, %v48
    %v50 = vrot.slane %v45, %v49
    %vm52 = vcmask 80896
    %v54 = vsel %vm52, %v42, 0
    %vm56 = vcmask 1041408
    %v58 = vsel %vm56, %v44, 0
    %60 = vmatprep.subr.mxu0 0.0
    %61 = vmatpush1.msra.mxu0 %v43
    %62 = vmatprep.subr.mxu0 0.0
    %63 = vmatpush1.msra.mxu0 %v58
    %64 = vmatprep.subr.mxu0 0.0
    %65 = vmatpush1.msra.mxu0 0.0
    %66 = vmatprep.subr.mxu0 0.0
    %67 = vmatpush1.msra.mxu0 0.0
    %68 = vmatprep.subr.mxu0 0.0
    %69 = vmatpush1.msra.mxu0 0.0
    %70 = vmatprep.subr.mxu0 0.0
    %71 = vmatpush1.msra.mxu0 0.0
    %72 = vmatprep.subr.mxu0 0.0
    %73 = vmatpush1.msra.mxu0 0.0
    %74 = vmatprep.subr.mxu0 0.0
    %75 = vmatpush1.msra.mxu0 0.0
    %76 = vmatprep.subr.mxu0 0.0
    %77 = vmatpush1.msra.mxu0 0.0
    %78 = vmatprep.subr.mxu0 0.0
    %79 = vmatpush1.msra.mxu0 0.0
    %80 = vmatprep.subr.mxu0 0.0
    %81 = vmatpush1.msra.mxu0 0.0
    %82 = vmatprep.subr.mxu0 0.0
    %83 = vmatpush1.msra.mxu0 0.0
    %84 = vmatprep.subr.mxu0 0.0
    %85 = vmatpush1.msra.mxu0 0.0
    %86 = vmatprep.subr.mxu0 0.0
    %87 = vmatpush1.msra.mxu0 0.0
    %88 = vmatprep.subr.mxu0 0.0
    %89 = vmatpush1.msra.mxu0 0.0
    %90 = vmatprep.subr.mxu0 0.0
    %91 = vmatpush1.msra.mxu0 0.0
    %92 = vmatprep.subr.mxu0 0.0
    %93 = vmatpush1.msra.mxu0 0.0
    %94 = vmatprep.subr.mxu0 0.0
    %95 = vmatpush1.msra.mxu0 0.0
    %96 = vmatprep.subr.mxu0 0.0
    %97 = vmatpush1.msra.mxu0 0.0
    %98 = vmatprep.subr.mxu0 0.0
    %99 = vmatpush1.msra.mxu0 0.0
    %100 = vmatprep.subr.mxu0 0.0
    %101 = vmatpush1.msra.mxu0 0.0
    %102 = vmatprep.subr.mxu0 0.0
    %103 = vmatpush1.msra.mxu0 0.0
    %104 = vmatprep.subr.mxu0 0.0
    %105 = vmatpush1.msra.mxu0 0.0
    %106 = vmatprep.subr.mxu0 0.0
    %107 = vmatpush1.msra.mxu0 0.0
    %108 = vmatprep.subr.mxu0 0.0
    %109 = vmatpush1.msra.mxu0 0.0
    %110 = vmatprep.subr.mxu0 0.0
    %111 = vmatpush1.msra.mxu0 0.0
    %112 = vmatprep.subr.mxu0 0.0
    %113 = vmatpush1.msra.mxu0 0.0
    %114 = vmatprep.subr.mxu0 0.0
    %115 = vmatpush1.msra.mxu0 0.0
    %116 = vmatprep.subr.mxu0 0.0
    %117 = vmatpush1.msra.mxu0 0.0
    %118 = vmatprep.subr.mxu0 0.0
    %119 = vmatpush1.msra.mxu0 0.0
    %120 = vmatprep.subr.mxu0 0.0
    %121 = vmatpush1.msra.mxu0 0.0
    %122 = vmatprep.subr.mxu0 0.0
    %123 = vmatpush1.msra.mxu0 0.0
    %124 = vmatprep.mubr.f32.mxu0 0.0
    %125 = vmatmul.mubr.f32.gmra.mrb[0].mxu0 %v54
    %v126 = vpop.f32.mrb[0].mxu0
    %v127 = vadd.f32 %v50, %v126
    %v128 = vpop.f32.mrb[0].mxu0
    %129 = vdwg.mxu0
    %130 = vst.msk [vmem:[#allocation7] sm:$0xff] %vm52, %v127
    // Predicated region
    $region22: #{tpu_custom_call.1} parent=1 // pred_check
      _
    $region23: #{tpu_custom_call.1} parent=1 // pred_check_branch
      %132 = sbr.rel (0) target = $region25
    $region24: #{tpu_custom_call.1} parent=1 // pred_region
      %s134 = ssub.s32 128, 128
      %135 = vsyncadd [#allocation4], %s134
      %s137 = sshll.u32 [#allocation7], 4
      %s138 = int_to_ptr.vmem [resolvable:$true] %s137
      %140 = dma.vmem_to_hbm [thread:$0]  %s138, 128, %s3, [#allocation4]
    $region25: #{tpu_custom_call.1} parent=1 // pred_fallthru
      _
    // Predicated region
    $region26: #{tpu_custom_call.1} parent=1 // pred_check
      _
    $region27: #{tpu_custom_call.1} parent=1 // pred_check_branch
      %142 = sbr.rel (0) target = $region29
    $region28: #{tpu_custom_call.1} parent=1 // pred_region
      %143 = dma.done [#allocation4], 128
    $region29: #{tpu_custom_call.1} parent=1 // pred_fallthru
      _
    %144 = vsyncpa [#allocation3], 1
    %145 = vsyncpa [#allocation6], 1
    %146 = vsyncpa [#allocation4], 1

</llo_original>
